<compile_context>
chip_gen: v5e
topology: v5e:2x2
jax: 0.10.0
libtpu: 0.0.40
codegen_flags: <defaults>
</compile_context>

<pallas_src>
import jax
import jax.numpy as jnp
from jax.experimental import pallas as pl
from jax.experimental.pallas import tpu as pltpu

_EPS = 1e-5          # torch.nn.InstanceNorm1d default
_LANES = 128
_SUBLANES = 8


# ----------------------------------------------------------------------------
# Budgets (generation dependent).
# ----------------------------------------------------------------------------
def _budgets():
    """Return (per-array block budget bytes, vmem_limit_bytes)."""
    vmem = None
    try:
        vmem = getattr(pltpu.get_tpu_info(), "vmem_capacity_bytes", None)
    except Exception:  # pragma: no cover - unknown platform / interpret mode
        vmem = None
    if vmem is not None and vmem >= 96 * 1024 * 1024:
        # v5e / v6e: 128 MiB physical VMEM -> bigger blocks, fewer grid steps,
        # larger DMAs.  (v5e's scoped default is only 16 MiB, so the explicit
        # vmem_limit_bytes below is required there.)
        return 4 * 1024 * 1024, 64 * 1024 * 1024
    # v7x (64 MiB physical, 32 MiB scoped default) or unknown: conservative.
    return 2 * 1024 * 1024, 32 * 1024 * 1024


def _largest_divisor_leq(n, cap):
    cap = max(1, min(n, cap))
    for d in range(cap, 0, -1):
        if n % d == 0:
            return d
    return 1


def _choose_tiles(B, T, C, itemsize, block_budget_bytes):
    """Pick tiling.  Returns (bb, tc, tt, two_pass)."""
    target = max(1, block_budget_bytes // itemsize)

    if C < _LANES:
        # TODO(synk): C < 128 means lane-sparse vregs and masked stores; a
        # lane-dense layout must come from the upstream producer (e.g. fold
        # batch into channels), not from a transpose at this HBM-bound
        # boundary (that would add a full extra read+write pass).
        tc_unit, n_c_units = C, 1
    else:
        # Lane-dense 128-multiple channel tiles; ragged last block is masked.
        tc_unit, n_c_units = _LANES, pl.cdiv(C, _LANES)

    if T * tc_unit > target:
        # ---- T-tiled two-pass path (large T) --------------------------------
        tt = (target // tc_unit) // _SUBLANES * _SUBLANES
        tt = max(_SUBLANES, min(tt, T))
        return 1, tc_unit, tt, True

    # ---- single-pass path: whole T per block --------------------------------
    tc_units = max(1, min(n_c_units, (target // T) // tc_unit))
    tc = tc_unit * tc_units
    bb = _largest_divisor_leq(B, max(1, target // (T * tc)))

    # v7x megacore: 2 TensorCores, each with its own HBM path -- make sure the
    # (fully parallel) grid has at least 2 blocks so both get work.
    if (B // bb) * pl.cdiv(C, tc) < 2:
        if B >= 2:
            bb = _largest_divisor_leq(B, B // 2)
        elif tc_units >= 2:
            tc = tc_unit * (tc_units // 2)
        # else: single tiny block; nothing useful to split.
    return bb, tc, T, False


# ----------------------------------------------------------------------------
# Kernels.
# ----------------------------------------------------------------------------
def _instance_norm_single_pass_kernel(xr_ref, xi_ref, or_ref, oi_ref):
    """Whole-T block: two-pass in-block stats, one normalize pass."""
    inv_t = 1.0 / xr_ref.shape[1]  # static Python float

    def _norm(x_ref, o_ref):
        x = x_ref[...].astype(jnp.float32)
        mean = jnp.sum(x, axis=1, keepdims=True) * inv_t
        xc = x - mean
        var = jnp.sum(xc * xc, axis=1, keepdims=True) * inv_t  # biased
        o_ref[...] = (xc * jax.lax.rsqrt(var + _EPS)).astype(o_ref.dtype)

    _norm(xr_ref, or_ref)
    _norm(xi_ref, oi_ref)


def _make_two_pass_kernel(T, tt, nt):
    """T-tiled path: pass 1 accumulates s1/s2 over T tiles, pass 2 re-reads x
    and normalizes.  (Single-pass E[x^2]-mean^2 accumulation here; the f32
    scratch plus the clamp keeps it accurate enough for normalization.)"""
    needs_t_mask = (T % tt) != 0
    inv_t = 1.0 / T

    def kernel(xr_ref, xi_ref, or_ref, oi_ref, s1r, s2r, s1i, s2i):
        t = pl.program_id(2)

        @pl.when(t == 0)
        def _():
            for s in (s1r, s2r, s1i, s2i):
                s[...] = jnp.zeros_like(s)

        def _mask_rows(x):
            if not needs_t_mask:
                return x
            t_blk = jnp.where(t < nt, t, t - nt)
            row = jax.lax.broadcasted_iota(jnp.int32, x.shape, 1)
            # Ragged last T tile: zero out padded rows so they do not pollute
            # the sums (mean divides by the true T).
            return jnp.where(t_blk * tt + row < T, x, 0.0)

        @pl.when(t < nt)
        def _():  # pass 1: accumulate statistics
            def _acc(x_ref, s1, s2):
                x = _mask_rows(x_ref[...].astype(jnp.float32))
                s1[...] += jnp.sum(x, axis=1, keepdims=True)
                s2[...] += jnp.sum(x * x, axis=1, keepdims=True)
            _acc(xr_ref, s1r, s2r)
            _acc(xi_ref, s1i, s2i)

        @pl.when(t >= nt)
        def _():  # pass 2: re-read x and normalize
            def _norm(x_ref, o_ref, s1, s2):
                x = x_ref[...].astype(jnp.float32)
                mean = s1[...] * inv_t
                var = jnp.maximum(s2[...] * inv_t - mean * mean, 0.0)
                scale = jax.lax.rsqrt(var + _EPS)
                # Padded T rows / C lanes produce garbage here; their stores
                # are masked by Pallas, so this is harmless by construction.
                o_ref[...] = ((x - mean) * scale).astype(o_ref.dtype)
            _norm(xr_ref, or_ref, s1r, s2r)
            _norm(xi_ref, oi_ref, s1i, s2i)

    return kernel


# ----------------------------------------------------------------------------
# Wrapper.
# ----------------------------------------------------------------------------
def instance_norm(xr, xi, *, block_budget_bytes=None, vmem_limit_bytes=None):
    """InstanceNorm over the seq axis of (B, T, C) inputs, applied to xr, xi."""
    assert xr.shape == xi.shape
    B, T, C = xr.shape
    itemsize = jnp.dtype(xr.dtype).itemsize

    default_budget, default_vmem = _budgets()
    budget = block_budget_bytes or default_budget
    vmem_limit = vmem_limit_bytes or default_vmem

    bb, tc, tt, two_pass = _choose_tiles(B, T, C, itemsize, budget)

    out_shape = (
        jax.ShapeDtypeStruct((B, T, C), xr.dtype),
        jax.ShapeDtypeStruct((B, T, C), xi.dtype),
    )
    nbytes = B * T * C * itemsize

    if not two_pass:
        grid = (B // bb, pl.cdiv(C, tc))
        block = pl.BlockSpec((bb, T, tc), lambda b, c: (b, 0, c))
        cost = pl.CostEstimate(
            flops=12 * B * T * C,        # ~6 VPU flops / element / array
            transcendentals=2 * B * C,   # one rsqrt per (batch, channel) per array
            bytes_accessed=4 * nbytes,   # 2 arrays read + 2 arrays written
        )
        return pl.pallas_call(
            _instance_norm_single_pass_kernel,
            out_shape=out_shape,
            grid=grid,
            in_specs=[block, block],
            out_specs=[block, block],
            compiler_params=pltpu.CompilerParams(
                dimension_semantics=("parallel", "parallel"),
                vmem_limit_bytes=vmem_limit,
            ),
            cost_estimate=cost,
        )(xr, xi)

    # ---- two-pass (T-tiled) path --------------------------------------------
    nt = pl.cdiv(T, tt)
    grid = (B // bb, pl.cdiv(C, tc), 2 * nt)
    # Pass 1 (t in [0, nt)) and pass 2 (t in [nt, 2*nt)) read the same T tiles.
    in_block = pl.BlockSpec((bb, tt, tc), lambda b, c, t: (b, t % nt, c))
    # Output index is pinned to block 0 during pass 1 (nothing is written, so
    # the unchanged index suppresses spurious write-backs), then tracks the T
    # tile during pass 2.
    out_block = pl.BlockSpec(
        (bb, tt, tc), lambda b, c, t: (b, jnp.maximum(t - nt, 0), c))
    cost = pl.CostEstimate(
        flops=12 * B * T * C,
        transcendentals=2 * B * C,
        bytes_accessed=6 * nbytes,       # inputs read twice + outputs written
    )
    return pl.pallas_call(
        _make_two_pass_kernel(T, tt, nt),
        out_shape=out_shape,
        grid=grid,
        in_specs=[in_block, in_block],
        out_specs=[out_block, out_block],
        scratch_shapes=[pltpu.VMEM((bb, 1, tc), jnp.float32)] * 4,
        compiler_params=pltpu.CompilerParams(
            dimension_semantics=("parallel", "parallel", "arbitrary"),
            vmem_limit_bytes=vmem_limit,
        ),
        cost_estimate=cost,
    )(xr, xi)


def instance_norm_ref(xr, xi):
    """Pure-JAX reference mirroring the PyTorch module."""
    def _norm(x):
        x32 = x.astype(jnp.float32)
        mean = jnp.mean(x32, axis=1, keepdims=True)
        var = jnp.var(x32, axis=1, keepdims=True)  # biased
        return ((x32 - mean) * jax.lax.rsqrt(var + _EPS)).astype(x.dtype)
    return _norm(xr), _norm(xi)


if __name__ == "__main__":
    key = jax.random.PRNGKey(0)
    kr, ki = jax.random.split(key)

    # Small shape consistent with the module: batch=2, seq=16, channels=32.
    # Non-zero mean / non-unit scale to exercise the statistics properly.
    B, T, C = 2, 16, 32
    xr = jax.random.normal(kr, (B, T, C), dtype=jnp.float32) * 2.0 + 3.0
    xi = jax.random.normal(ki, (B, T, C), dtype=jnp.float32) * 0.5 - 1.0

    out_r, out_i = instance_norm(xr, xi)
    jax.block_until_ready((out_r, out_i))
    ref_r, ref_i = instance_norm_ref(xr, xi)
    assert jnp.allclose(out_r, ref_r, atol=1e-5, rtol=1e-5)
    assert jnp.allclose(out_i, ref_i, atol=1e-5, rtol=1e-5)

    # Also exercise the T-tiled two-pass path (forced via a tiny block budget)
    # with ragged T and ragged C tiles, still at a small shape.
    B2, T2, C2 = 2, 56, 160
    xr2 = jax.random.normal(kr, (B2, T2, C2), dtype=jnp.float32) + 1.5
    xi2 = jax.random.normal(ki, (B2, T2, C2), dtype=jnp.float32) - 0.5
    out_r2, out_i2 = instance_norm(xr2, xi2, block_budget_bytes=8 * 1024)
    jax.block_until_ready((out_r2, out_i2))
    ref_r2, ref_i2 = instance_norm_ref(xr2, xi2)
    assert jnp.allclose(out_r2, ref_r2, atol=1e-4, rtol=1e-4)
    assert jnp.allclose(out_i2, ref_i2, atol=1e-4, rtol=1e-4)

    print("KERNEL_OK")
</pallas_src>

<mosaic_0001>
module attributes {stable_mosaic.version = 11 : i64} {
  func.func @_instance_norm_single_pass_kernel(%arg0: i32, %arg1: i32, %arg2: memref<1x16x32xf32, #tpu.memory_space<vmem>>, %arg3: memref<1x16x32xf32, #tpu.memory_space<vmem>>, %arg4: memref<1x16x32xf32, #tpu.memory_space<vmem>>, %arg5: memref<1x16x32xf32, #tpu.memory_space<vmem>>) attributes {dimension_semantics = [#tpu.dimension_semantics<parallel>, #tpu.dimension_semantics<parallel>], iteration_bounds = array<i64: 2, 1>, scalar_prefetch = 0 : i64, scratch_operands = 0 : i64, tpu.core_type = #tpu.core_type<tc>, window_params = [{transform_indices = @transform_0, window_bounds = array<i64: 1, 16, 32>}, {transform_indices = @transform_1, window_bounds = array<i64: 1, 16, 32>}, {transform_indices = @transform_2, window_bounds = array<i64: 1, 16, 32>}, {transform_indices = @transform_3, window_bounds = array<i64: 1, 16, 32>}]} {
    %c0 = arith.constant 0 : index
    %c0_0 = arith.constant 0 : index
    %c0_1 = arith.constant 0 : index
    %0 = vector.load %arg2[%c0, %c0_0, %c0_1] : memref<1x16x32xf32, #tpu.memory_space<vmem>>, vector<1x16x32xf32>
    %cst = arith.constant dense<0.000000e+00> : vector<1x32xf32>
    %1 = vector.multi_reduction <add>, %0, %cst [1] : vector<1x16x32xf32> to vector<1x32xf32>
    %2 = vector.shape_cast %1 : vector<1x32xf32> to vector<1x1x32xf32>
    %cst_2 = arith.constant 6.250000e-02 : f32
    %3 = vector.broadcast %cst_2 : f32 to vector<1x1x32xf32>
    %4 = arith.mulf %2, %3 : vector<1x1x32xf32>
    %5 = vector.broadcast %4 : vector<1x1x32xf32> to vector<1x16x32xf32>
    %6 = arith.subf %0, %5 : vector<1x16x32xf32>
    %7 = arith.mulf %6, %6 : vector<1x16x32xf32>
    %cst_3 = arith.constant dense<0.000000e+00> : vector<1x32xf32>
    %8 = vector.multi_reduction <add>, %7, %cst_3 [1] : vector<1x16x32xf32> to vector<1x32xf32>
    %9 = vector.shape_cast %8 : vector<1x32xf32> to vector<1x1x32xf32>
    %cst_4 = arith.constant 6.250000e-02 : f32
    %10 = vector.broadcast %cst_4 : f32 to vector<1x1x32xf32>
    %11 = arith.mulf %9, %10 : vector<1x1x32xf32>
    %cst_5 = arith.constant 9.99999974E-6 : f32
    %12 = vector.broadcast %cst_5 : f32 to vector<1x1x32xf32>
    %13 = arith.addf %11, %12 : vector<1x1x32xf32>
    %14 = math.rsqrt %13 : vector<1x1x32xf32>
    %15 = vector.broadcast %14 : vector<1x1x32xf32> to vector<1x16x32xf32>
    %16 = arith.mulf %6, %15 : vector<1x16x32xf32>
    %c0_6 = arith.constant 0 : index
    %c0_7 = arith.constant 0 : index
    %c0_8 = arith.constant 0 : index
    %17 = vector.load %arg4[%c0_6, %c0_7, %c0_8] : memref<1x16x32xf32, #tpu.memory_space<vmem>>, vector<1x16x32xf32>
    tpu.vector_store %arg4[%c0_6, %c0_7, %c0_8], %16 {strides = array<i32>} : memref<1x16x32xf32, #tpu.memory_space<vmem>>, vector<1x16x32xf32>,
    %c0_9 = arith.constant 0 : index
    %c0_10 = arith.constant 0 : index
    %c0_11 = arith.constant 0 : index
    %18 = vector.load %arg3[%c0_9, %c0_10, %c0_11] : memref<1x16x32xf32, #tpu.memory_space<vmem>>, vector<1x16x32xf32>
    %cst_12 = arith.constant dense<0.000000e+00> : vector<1x32xf32>
    %19 = vector.multi_reduction <add>, %18, %cst_12 [1] : vector<1x16x32xf32> to vector<1x32xf32>
    %20 = vector.shape_cast %19 : vector<1x32xf32> to vector<1x1x32xf32>
    %cst_13 = arith.constant 6.250000e-02 : f32
    %21 = vector.broadcast %cst_13 : f32 to vector<1x1x32xf32>
    %22 = arith.mulf %20, %21 : vector<1x1x32xf32>
    %23 = vector.broadcast %22 : vector<1x1x32xf32> to vector<1x16x32xf32>
    %24 = arith.subf %18, %23 : vector<1x16x32xf32>
    %25 = arith.mulf %24, %24 : vector<1x16x32xf32>
    %cst_14 = arith.constant dense<0.000000e+00> : vector<1x32xf32>
    %26 = vector.multi_reduction <add>, %25, %cst_14 [1] : vector<1x16x32xf32> to vector<1x32xf32>
    %27 = vector.shape_cast %26 : vector<1x32xf32> to vector<1x1x32xf32>
    %cst_15 = arith.constant 6.250000e-02 : f32
    %28 = vector.broadcast %cst_15 : f32 to vector<1x1x32xf32>
    %29 = arith.mulf %27, %28 : vector<1x1x32xf32>
    %cst_16 = arith.constant 9.99999974E-6 : f32
    %30 = vector.broadcast %cst_16 : f32 to vector<1x1x32xf32>
    %31 = arith.addf %29, %30 : vector<1x1x32xf32>
    %32 = math.rsqrt %31 : vector<1x1x32xf32>
    %33 = vector.broadcast %32 : vector<1x1x32xf32> to vector<1x16x32xf32>
    %34 = arith.mulf %24, %33 : vector<1x16x32xf32>
    %c0_17 = arith.constant 0 : index
    %c0_18 = arith.constant 0 : index
    %c0_19 = arith.constant 0 : index
    %35 = vector.load %arg5[%c0_17, %c0_18, %c0_19] : memref<1x16x32xf32, #tpu.memory_space<vmem>>, vector<1x16x32xf32>
    tpu.vector_store %arg5[%c0_17, %c0_18, %c0_19], %34 {strides = array<i32>} : memref<1x16x32xf32, #tpu.memory_space<vmem>>, vector<1x16x32xf32>,
    return
  }
  func.func @transform_0(%arg0: i32, %arg1: i32) -> (i32, i32, i32) {
    %c0_i32 = arith.constant 0 : i32
    %c0_i32_0 = arith.constant 0 : i32
    return %arg0, %c0_i32, %arg1 : i32, i32, i32
  }
  func.func @transform_1(%arg0: i32, %arg1: i32) -> (i32, i32, i32) {
    %c0_i32 = arith.constant 0 : i32
    %c0_i32_0 = arith.constant 0 : i32
    return %arg0, %c0_i32, %arg1 : i32, i32, i32
  }
  func.func @transform_2(%arg0: i32, %arg1: i32) -> (i32, i32, i32) {
    %c0_i32 = arith.constant 0 : i32
    %c0_i32_0 = arith.constant 0 : i32
    return %arg0, %c0_i32, %arg1 : i32, i32, i32
  }
  func.func @transform_3(%arg0: i32, %arg1: i32) -> (i32, i32, i32) {
    %c0_i32 = arith.constant 0 : i32
    %c0_i32_0 = arith.constant 0 : i32
    return %arg0, %c0_i32, %arg1 : i32, i32, i32
  }
}

</mosaic_0001>

<llo_original>
// kernel: tpu_custom_call.1
$region0: #{tpu_custom_call.1}
  #allocation0 [shape = 'u32[]', space=smem, size = 0x4, offset = 0x4, fixed_abs, tag = 'smem constant byte address 0x4 - core index']
  #allocation1 [shape = 'u32[72,128]{1,0:T(1,128)}', space=vmem, size = 0x9000, scoped, tag = 'internal scratch']
  %s0 = inlined_call_operand.hbm [shape: f32[2,16,32], index: 0, kind: input, shape index: {}]
  %s1 = inlined_call_operand.hbm [shape: f32[2,16,32], index: 1, kind: input, shape index: {}]
  %s2 = inlined_call_operand.hbm [shape: f32[2,16,32], index: 2, kind: output, shape index: {0}]
  %s3 = inlined_call_operand.hbm [shape: f32[2,16,32], index: 3, kind: output, shape index: {1}]
  %4 = xla_tuple %s2, %s3
  %s5 = sld [smem:[#allocation0]]
  $region57: #{tpu_custom_call.1} parent=0
    _
  %s7 = ssub.s32 1, %s5
  %s8 = scalar_select 0, %s7, %s5
  $region1: #{tpu_custom_call.1} parent=0
    #allocation2 [shape = 'u8[16384]{0}', space=vmem, size = 0x4000, scoped, tag = 'input window, operand 0']
    #allocation3 [shape = 's32[2]{0}', space=sflag, size = 0x8, scoped, tag = 'scoped memory for tpu_custom_call.1']
    #allocation4 [shape = 's32[2]{0}', space=sflag, size = 0x8, scoped, tag = 'scoped memory for tpu_custom_call.1']
    #allocation5 [shape = 'u8[16384]{0}', space=vmem, size = 0x4000, scoped, tag = 'input window, operand 1']
    #allocation6 [shape = 's32[2]{0}', space=sflag, size = 0x8, scoped, tag = 'scoped memory for tpu_custom_call.1']
    #allocation7 [shape = 'u8[16384]{0}', space=vmem, size = 0x4000, scoped, tag = 'output window, operand 0']
    #allocation8 [shape = 'u8[16384]{0}', space=vmem, size = 0x4000, scoped, tag = 'output window, operand 1']
    #allocation9 [shape = 's32[2]{0}', space=sflag, size = 0x8, scoped, tag = 'scoped memory for tpu_custom_call.1']
    %9 = vsyncpa [#allocation3], 0
    %s10 = scalar_lea.sflag [#allocation3], 1
    %11 = vsyncpa %s10, 0
    %12 = vsyncpa [#allocation6], 0
    %s13 = scalar_lea.sflag [#allocation6], 1
    %14 = vsyncpa %s13, 0
    %15 = vsyncpa [#allocation4], 0
    %s16 = scalar_lea.sflag [#allocation4], 1
    %17 = vsyncpa %s16, 0
    %18 = vsyncpa [#allocation9], 0
    %s19 = scalar_lea.sflag [#allocation9], 1
    %20 = vsyncpa %s19, 0
    loop: start=0, step=1, limit=4
    $region2: #{tpu_custom_call.1} parent=1 // loop_pre_header
      _
    $region3: #{tpu_custom_call.1} parent=1 // loop_header
      %s22 = sphi 0, %s26
      %p23 = scmp.ge.s32.totalorder %s22, 4
      %s29 = sphi 0, %s41
      %s30 = sphi 0, %s37
      %s31 = sphi 0, %s29
      %s32 = sphi 0, %s30
      %s33 = sphi 0, %s31
      %s34 = sphi 0, %s32
      %s46 = sphi 0, %s48
      %s49 = sphi 0, %s46
      %s50 = sphi 0, %s49
      %s66 = sphi 0, %s50
      %s74 = sphi 0, %s76
      %s77 = sphi 0, %s74
      %s78 = sphi 0, %s77
      %s94 = sphi 0, %s78
      %s102 = sphi 0, %s104
      %s105 = sphi 0, %s102
      %s106 = sphi 0, %s105
      %s122 = sphi 0, %s106
      %s130 = sphi 0, %s132
      %s133 = sphi 0, %s130
      %s134 = sphi 0, %s133
      %s150 = sphi 0, %s134
    $region4: #{tpu_custom_call.1} parent=1 // loop_header_branch
      %25 = sbr.rel (%p23) target = $region8
    $region5: #{tpu_custom_call.1} parent=1 // loop_body
      %s27 = ssub.s32 %s22, 1
      %s28 = ssub.s32 %s22, 2
      %s35 = sadd.s32 1, %s30
      %p36 = scmp.ge.s32.totalorder %s35, 1
      %s37 = scalar_select %p36, 0, %s35
      %s38 = sadd.s32 1, %s29
      %s39 = scalar_select %p36, %s38, %s29
      %p40 = scmp.ge.s32.totalorder %s39, 2
      %s41 = scalar_select %p40, 0, %s39
      %s42 = ssub.s32 %s29, %s41
      %s43 = ssub.s32 %s30, %s37
      %s44 = sor.u32 %s42, %s43
      %p45 = scmp.eq.s32.totalorder %s44, 0
      %s47 = sadd.s32 %s46, 1
      %s48 = scalar_select %p45, %s46, %s47
      %p51 = pneg %p45
      %p52 = scmp.eq.s32.totalorder %s22, 1
      %p53 = por %p51, %p52
      %p54 = scmp.ne.s32.totalorder %s46, %s49
      %p55 = scmp.eq.s32.totalorder %s22, 0
      %p56 = por %p54, %p55
      %p57 = scmp.ne.s32.totalorder %s46, %s49
      %p58 = scmp.eq.s32.totalorder %s27, 1
      %p59 = por %p57, %p58
      %p60 = scmp.ne.s32.totalorder %s49, %s50
      %p61 = scmp.eq.s32.totalorder %s27, 0
      %p62 = por %p60, %p61
      %p63 = scmp.ne.s32.totalorder %s49, %s50
      %p64 = scmp.eq.s32.totalorder %s28, 1
      %p65 = por %p63, %p64
      %p67 = scmp.ne.s32.totalorder %s50, %s66
      %p68 = scmp.eq.s32.totalorder %s28, 0
      %p69 = por %p67, %p68
      %s70 = ssub.s32 %s29, %s41
      %s71 = ssub.s32 %s30, %s37
      %s72 = sor.u32 %s70, %s71
      %p73 = scmp.eq.s32.totalorder %s72, 0
      %s75 = sadd.s32 %s74, 1
      %s76 = scalar_select %p73, %s74, %s75
      %p79 = pneg %p73
      %p80 = scmp.eq.s32.totalorder %s22, 1
      %p81 = por %p79, %p80
      %p82 = scmp.ne.s32.totalorder %s74, %s77
      %p83 = scmp.eq.s32.totalorder %s22, 0
      %p84 = por %p82, %p83
      %p85 = scmp.ne.s32.totalorder %s74, %s77
      %p86 = scmp.eq.s32.totalorder %s27, 1
      %p87 = por %p85, %p86
      %p88 = scmp.ne.s32.totalorder %s77, %s78
      %p89 = scmp.eq.s32.totalorder %s27, 0
      %p90 = por %p88, %p89
      %p91 = scmp.ne.s32.totalorder %s77, %s78
      %p92 = scmp.eq.s32.totalorder %s28, 1
      %p93 = por %p91, %p92
      %p95 = scmp.ne.s32.totalorder %s78, %s94
      %p96 = scmp.eq.s32.totalorder %s28, 0
      %p97 = por %p95, %p96
      %s98 = ssub.s32 %s29, %s41
      %s99 = ssub.s32 %s30, %s37
      %s100 = sor.u32 %s98, %s99
      %p101 = scmp.eq.s32.totalorder %s100, 0
      %s103 = sadd.s32 %s102, 1
      %s104 = scalar_select %p101, %s102, %s103
      %p107 = pneg %p101
      %p108 = scmp.eq.s32.totalorder %s22, 1
      %p109 = por %p107, %p108
      %p110 = scmp.ne.s32.totalorder %s102, %s105
      %p111 = scmp.eq.s32.totalorder %s22, 0
      %p112 = por %p110, %p111
      %p113 = scmp.ne.s32.totalorder %s102, %s105
      %p114 = scmp.eq.s32.totalorder %s27, 1
      %p115 = por %p113, %p114
      %p116 = scmp.ne.s32.totalorder %s105, %s106
      %p117 = scmp.eq.s32.totalorder %s27, 0
      %p118 = por %p116, %p117
      %p119 = scmp.ne.s32.totalorder %s105, %s106
      %p120 = scmp.eq.s32.totalorder %s28, 1
      %p121 = por %p119, %p120
      %p123 = scmp.ne.s32.totalorder %s106, %s122
      %p124 = scmp.eq.s32.totalorder %s28, 0
      %p125 = por %p123, %p124
      %s126 = ssub.s32 %s29, %s41
      %s127 = ssub.s32 %s30, %s37
      %s128 = sor.u32 %s126, %s127
      %p129 = scmp.eq.s32.totalorder %s128, 0
      %s131 = sadd.s32 %s130, 1
      %s132 = scalar_select %p129, %s130, %s131
      %p135 = pneg %p129
      %p136 = scmp.eq.s32.totalorder %s22, 1
      %p137 = por %p135, %p136
      %p138 = scmp.ne.s32.totalorder %s130, %s133
      %p139 = scmp.eq.s32.totalorder %s22, 0
      %p140 = por %p138, %p139
      %p141 = scmp.ne.s32.totalorder %s130, %s133
      %p142 = scmp.eq.s32.totalorder %s27, 1
      %p143 = por %p141, %p142
      %p144 = scmp.ne.s32.totalorder %s133, %s134
      %p145 = scmp.eq.s32.totalorder %s27, 0
      %p146 = por %p144, %p145
      %p147 = scmp.ne.s32.totalorder %s133, %s134
      %p148 = scmp.eq.s32.totalorder %s28, 1
      %p149 = por %p147, %p148
      %p151 = scmp.ne.s32.totalorder %s134, %s150
      %p152 = scmp.eq.s32.totalorder %s28, 0
      %p153 = por %p151, %p152
      %p154 = scmp.le.s32.totalorder 1, %s22
      %p155 = scmp.lt.s32.totalorder %s22, 3
      %p156 = pnand %p154, %p155
      %p157 = pneg %p156
      // Predicated region
      $region9: #{tpu_custom_call.1} parent=5 // pred_check
        _
      $region10: #{tpu_custom_call.1} parent=5 // pred_check_branch
        %159 = sbr.rel (%p156) target = $region12
      $region11: #{tpu_custom_call.1} parent=5 // pred_region
        %s160 = ssub.s32 %s22, 1
      $region12: #{tpu_custom_call.1} parent=5 // pred_fallthru
        _
      %p161 = scmp.lt.s32.totalorder %s22, 2
      // Predicated region
      $region13: #{tpu_custom_call.1} parent=5 // pred_check
        %p162 = pneg %p161
      $region14: #{tpu_custom_call.1} parent=5 // pred_check_branch
        %164 = sbr.rel (%p162) target = $region16
      $region15: #{tpu_custom_call.1} parent=5 // pred_region
        // Predicated region
        $region17: #{tpu_custom_call.1} parent=15 // pred_check
          %p165 = pneg %p56
        $region18: #{tpu_custom_call.1} parent=15 // pred_check_branch
          %167 = sbr.rel (%p165) target = $region20
        $region19: #{tpu_custom_call.1} parent=15 // pred_region
          %s168 = sand.u32 %s46, 1
          %s169 = scalar_lea.sflag [#allocation3], %s168
          %s170 = sand.u32 %s46, 1
          %s171 = smul.addr %s170, 16
          %s172 = scalar_lea.vmem [#allocation2], %s171
          %174 = vsyncadd %s169, 0
          %s175 = smul.addr %s29, 2
          %s176 = sadd.s32 %s30, %s175
          %s177 = smul.addr %s176, 8
          %s178 = scalar_lea.hbm %s0, %s177
          %s179 = sshll.u32 %s178, 4
          %s180 = int_to_ptr.hbm [resolvable:$true] %s179
          %s181 = sshll.u32 %s172, 4
          %s182 = int_to_ptr.vmem [resolvable:$true] %s181
          %187 = dma.hbm_to_vmem [thread:$0]  %s180, 256, %s182, %s169, 128, 128, 8
        $region20: #{tpu_custom_call.1} parent=15 // pred_fallthru
          _
        // Predicated region
        $region21: #{tpu_custom_call.1} parent=15 // pred_check
          %p188 = pneg %p84
        $region22: #{tpu_custom_call.1} parent=15 // pred_check_branch
          %190 = sbr.rel (%p188) target = $region24
        $region23: #{tpu_custom_call.1} parent=15 // pred_region
          %s191 = sand.u32 %s74, 1
          %s192 = scalar_lea.sflag [#allocation6], %s191
          %s193 = sand.u32 %s74, 1
          %s194 = smul.addr %s193, 16
          %s195 = scalar_lea.vmem [#allocation5], %s194
          %197 = vsyncadd %s192, 0
          %s198 = smul.addr %s29, 2
          %s199 = sadd.s32 %s30, %s198
          %s200 = smul.addr %s199, 8
          %s201 = scalar_lea.hbm %s1, %s200
          %s202 = sshll.u32 %s201, 4
          %s203 = int_to_ptr.hbm [resolvable:$true] %s202
          %s204 = sshll.u32 %s195, 4
          %s205 = int_to_ptr.vmem [resolvable:$true] %s204
          %210 = dma.hbm_to_vmem [thread:$0]  %s203, 256, %s205, %s192, 128, 128, 8
        $region24: #{tpu_custom_call.1} parent=15 // pred_fallthru
          _
      $region16: #{tpu_custom_call.1} parent=5 // pred_fallthru
        _
      %p211 = scmp.le.s32.totalorder 1, %s22
      %p212 = scmp.lt.s32.totalorder %s22, 3
      %p213 = pnand %p211, %p212
      %p214 = pneg %p213
      // Predicated region
      $region25: #{tpu_custom_call.1} parent=5 // pred_check
        _
      $region26: #{tpu_custom_call.1} parent=5 // pred_check_branch
        %216 = sbr.rel (%p213) target = $region28
      $region27: #{tpu_custom_call.1} parent=5 // pred_region
        %s217 = ssub.s32 %s22, 1
        %s218 = sand.u32 %s49, 1
        %s219 = scalar_lea.sflag [#allocation3], %s218
        %s220 = sand.u32 %s49, 1
        %s221 = smul.addr %s220, 16
        %s222 = scalar_lea.vmem [#allocation2], %s221
        // Predicated region
        $region29: #{tpu_custom_call.1} parent=27 // pred_check
          %p223 = pneg %p62
        $region30: #{tpu_custom_call.1} parent=27 // pred_check_branch
          %225 = sbr.rel (%p223) target = $region32
        $region31: #{tpu_custom_call.1} parent=27 // pred_region
          %227 = dma.done %s219, 256
        $region32: #{tpu_custom_call.1} parent=27 // pred_fallthru
          _
        %s228 = sand.u32 %s77, 1
        %s229 = scalar_lea.sflag [#allocation6], %s228
        %s230 = sand.u32 %s77, 1
        %s231 = smul.addr %s230, 16
        %s232 = scalar_lea.vmem [#allocation5], %s231
        // Predicated region
        $region33: #{tpu_custom_call.1} parent=27 // pred_check
          %p233 = pneg %p90
        $region34: #{tpu_custom_call.1} parent=27 // pred_check_branch
          %235 = sbr.rel (%p233) target = $region36
        $region35: #{tpu_custom_call.1} parent=27 // pred_region
          %237 = dma.done %s229, 256
        $region36: #{tpu_custom_call.1} parent=27 // pred_fallthru
          _
        %s238 = sand.u32 %s49, 1
        %s239 = scalar_lea.sflag [#allocation3], %s238
        %s240 = sand.u32 %s49, 1
        %s241 = smul.addr %s240, 16
        %s242 = scalar_lea.vmem [#allocation2], %s241
        %p243 = pneg %p62
        %p244 = pneg %p59
        %s245 = sand.u32 %s77, 1
        %s246 = scalar_lea.sflag [#allocation6], %s245
        %s247 = sand.u32 %s77, 1
        %s248 = smul.addr %s247, 16
        %s249 = scalar_lea.vmem [#allocation5], %s248
        %p250 = pneg %p90
        %p251 = pneg %p87
        %p252 = pneg %p118
        %p253 = pneg %p115
        %s254 = sand.u32 %s105, 1
        %s255 = scalar_lea.sflag [#allocation4], %s254
        %s256 = sand.u32 %s105, 1
        %s257 = smul.addr %s256, 16
        %s258 = scalar_lea.vmem [#allocation7], %s257
        %p259 = pneg %p146
        %p260 = pneg %p143
        %s261 = sand.u32 %s133, 1
        %s262 = scalar_lea.sflag [#allocation9], %s261
        %s263 = sand.u32 %s133, 1
        %s264 = smul.addr %s263, 16
        %s265 = scalar_lea.vmem [#allocation8], %s264
        %v266 = vld [vmem:[%s222] sm:$0xff]
        %v267 = vld [vmem:[%s222 + $0x8] sm:$0xff]
        %vm268 = vcmask 261120
        %v269 = vsel %vm268, %v266, 0.0
        %v270 = vsel %vm268, %v267, 0.0
        %v271 = vadd.f32 %v269, %v270
        %v272 = vrot.slane %v271, 4
        %v273 = vadd.f32 %v271, %v272
        %v274 = vrot.slane %v273, 2
        %v275 = vadd.f32 %v273, %v274
        %v276 = vrot.slane %v275, 1
        %v277 = vadd.f32 %v275, %v276
        %v278 = vmul.f32 %v277, 0.0625
        %v279 = vsub.f32 %v266, %v278
        %v280 = vsub.f32 %v267, %v278
        %v281 = vmul.f32 %v279, %v279
        %v282 = vmul.f32 %v280, %v280
        %v283 = vsel %vm268, %v281, 0.0
        %v284 = vsel %vm268, %v282, 0.0
        %v285 = vadd.f32 %v283, %v284
        %v286 = vrot.slane %v285, 4
        %v287 = vadd.f32 %v285, %v286
        %v288 = vrot.slane %v287, 2
        %v289 = vadd.f32 %v287, %v288
        %v290 = vrot.slane %v289, 1
        %v291 = vadd.f32 %v289, %v290
        %v292 = vmul.f32 %v291, 0.0625
        %v293 = vadd.f32 %v292, 1e-05
        %v294 = vrsqrt.pop %v293
        %v295 = vmul.f32 %v294, %v293
        %v296 = vmul.f32 %v295, %v294
        %v297 = vmul.f32 0.5, %v296
        %v298 = vsub.f32 1.5, %v297
        %v299 = vmul.f32 %v294, %v298
        %vm300 = vweird.f32 %v293
        %vm301 = vweird.f32 %v294
        %vm302 = vmor %vm300, %vm301
        %v303 = vsel %vm302, %v294, %v299
        %v304 = vmul.f32 %v279, %v303
        %v305 = vmul.f32 %v280, %v303
        %306 = vst.msk [vmem:[%s258] sm:$0xff] %vm268, %v304
        %307 = vst.msk [vmem:[%s258 + $0x8] sm:$0xff] %vm268, %v305
        %v308 = vld [vmem:[%s232] sm:$0xff]
        %v309 = vld [vmem:[%s232 + $0x8] sm:$0xff]
        %v310 = vsel %vm268, %v308, 0.0
        %v311 = vsel %vm268, %v309, 0.0
        %v312 = vadd.f32 %v310, %v311
        %v313 = vrot.slane %v312, 4
        %v314 = vadd.f32 %v312, %v313
        %v315 = vrot.slane %v314, 2
        %v316 = vadd.f32 %v314, %v315
        %v317 = vrot.slane %v316, 1
        %v318 = vadd.f32 %v316, %v317
        %v319 = vmul.f32 %v318, 0.0625
        %v320 = vsub.f32 %v308, %v319
        %v321 = vsub.f32 %v309, %v319
        %v322 = vmul.f32 %v320, %v320
        %v323 = vmul.f32 %v321, %v321
        %v324 = vsel %vm268, %v322, 0.0
        %v325 = vsel %vm268, %v323, 0.0
        %v326 = vadd.f32 %v324, %v325
        %v327 = vrot.slane %v326, 4
        %v328 = vadd.f32 %v326, %v327
        %v329 = vrot.slane %v328, 2
        %v330 = vadd.f32 %v328, %v329
        %v331 = vrot.slane %v330, 1
        %v332 = vadd.f32 %v330, %v331
        %v333 = vmul.f32 %v332, 0.0625
        %v334 = vadd.f32 %v333, 1e-05
        %v335 = vrsqrt.pop %v334
        %v336 = vmul.f32 %v335, %v334
        %v337 = vmul.f32 %v336, %v335
        %v338 = vmul.f32 0.5, %v337
        %v339 = vsub.f32 1.5, %v338
        %v340 = vmul.f32 %v335, %v339
        %vm341 = vweird.f32 %v334
        %vm342 = vweird.f32 %v335
        %vm343 = vmor %vm341, %vm342
        %v344 = vsel %vm343, %v335, %v340
        %v345 = vmul.f32 %v320, %v344
        %v346 = vmul.f32 %v321, %v344
        %347 = vst.msk [vmem:[%s265] sm:$0xff] %vm268, %v345
        %348 = vst.msk [vmem:[%s265 + $0x8] sm:$0xff] %vm268, %v346
        %s349 = sand.u32 %s105, 1
        %s350 = scalar_lea.sflag [#allocation4], %s349
        %s351 = sand.u32 %s105, 1
        %s352 = smul.addr %s351, 16
        %s353 = scalar_lea.vmem [#allocation7], %s352
        %s354 = sand.u32 %s133, 1
        %s355 = scalar_lea.sflag [#allocation9], %s354
        %s356 = sand.u32 %s133, 1
        %s357 = smul.addr %s356, 16
        %s358 = scalar_lea.vmem [#allocation8], %s357
        // Predicated region
        $region37: #{tpu_custom_call.1} parent=27 // pred_check
          %p359 = pneg %p115
        $region38: #{tpu_custom_call.1} parent=27 // pred_check_branch
          %361 = sbr.rel (%p359) target = $region40
        $region39: #{tpu_custom_call.1} parent=27 // pred_region
          %363 = vsyncadd %s350, 0
          %s364 = smul.addr %s31, 2
          %s365 = sadd.s32 %s32, %s364
          %s366 = smul.addr %s365, 8
          %s367 = scalar_lea.hbm %s2, %s366
          %s368 = sshll.u32 %s353, 4
          %s369 = int_to_ptr.vmem [resolvable:$true] %s368
          %s370 = sshll.u32 %s367, 4
          %s371 = int_to_ptr.hbm [resolvable:$true] %s370
          %376 = dma.vmem_to_hbm [thread:$0]  %s369, 256, %s371, %s350, 128, 128, 8
        $region40: #{tpu_custom_call.1} parent=27 // pred_fallthru
          _
        // Predicated region
        $region41: #{tpu_custom_call.1} parent=27 // pred_check
          %p377 = pneg %p143
        $region42: #{tpu_custom_call.1} parent=27 // pred_check_branch
          %379 = sbr.rel (%p377) target = $region44
        $region43: #{tpu_custom_call.1} parent=27 // pred_region
          %381 = vsyncadd %s355, 0
          %s382 = smul.addr %s31, 2
          %s383 = sadd.s32 %s32, %s382
          %s384 = smul.addr %s383, 8
          %s385 = scalar_lea.hbm %s3, %s384
          %s386 = sshll.u32 %s358, 4
          %s387 = int_to_ptr.vmem [resolvable:$true] %s386
          %s388 = sshll.u32 %s385, 4
          %s389 = int_to_ptr.hbm [resolvable:$true] %s388
          %394 = dma.vmem_to_hbm [thread:$0]  %s387, 256, %s389, %s355, 128, 128, 8
        $region44: #{tpu_custom_call.1} parent=27 // pred_fallthru
          _
      $region28: #{tpu_custom_call.1} parent=5 // pred_fallthru
        _
      %p395 = scmp.le.s32.totalorder 2, %s22
      // Predicated region
      $region45: #{tpu_custom_call.1} parent=5 // pred_check
        %p396 = pneg %p395
      $region46: #{tpu_custom_call.1} parent=5 // pred_check_branch
        %398 = sbr.rel (%p396) target = $region48
      $region47: #{tpu_custom_call.1} parent=5 // pred_region
        %s399 = ssub.s32 %s22, 2
        // Predicated region
        $region49: #{tpu_custom_call.1} parent=47 // pred_check
          %p400 = pneg %p121
        $region50: #{tpu_custom_call.1} parent=47 // pred_check_branch
          %402 = sbr.rel (%p400) target = $region52
        $region51: #{tpu_custom_call.1} parent=47 // pred_region
          %s403 = sand.u32 %s106, 1
          %s404 = scalar_lea.sflag [#allocation4], %s403
          %s405 = sand.u32 %s106, 1
          %s406 = smul.addr %s405, 16
          %s407 = scalar_lea.vmem [#allocation7], %s406
          %409 = dma.done %s404, 256
        $region52: #{tpu_custom_call.1} parent=47 // pred_fallthru
          _
        // Predicated region
        $region53: #{tpu_custom_call.1} parent=47 // pred_check
          %p410 = pneg %p149
        $region54: #{tpu_custom_call.1} parent=47 // pred_check_branch
          %412 = sbr.rel (%p410) target = $region56
        $region55: #{tpu_custom_call.1} parent=47 // pred_region
          %s413 = sand.u32 %s134, 1
          %s414 = scalar_lea.sflag [#allocation9], %s413
          %s415 = sand.u32 %s134, 1
          %s416 = smul.addr %s415, 16
          %s417 = scalar_lea.vmem [#allocation8], %s416
          %419 = dma.done %s414, 256
        $region56: #{tpu_custom_call.1} parent=47 // pred_fallthru
          _
      $region48: #{tpu_custom_call.1} parent=5 // pred_fallthru
        _
    $region6: #{tpu_custom_call.1} parent=1 // loop_footer
      %s26 = sadd.s32 1, %s22
    $region7: #{tpu_custom_call.1} parent=1 // loop_footer_branch
      %21 = sbr.rel target = $region3
    $region8: #{tpu_custom_call.1} parent=1 // loop_exit
      _
    %420 = vsyncpa [#allocation3], 1
    %s421 = scalar_lea.sflag [#allocation3], 1
    %422 = vsyncpa %s421, 1
    %423 = vsyncpa [#allocation6], 1
    %s424 = scalar_lea.sflag [#allocation6], 1
    %425 = vsyncpa %s424, 1
    %426 = vsyncpa [#allocation4], 1
    %s427 = scalar_lea.sflag [#allocation4], 1
    %428 = vsyncpa %s427, 1
    %429 = vsyncpa [#allocation9], 1
    %s430 = scalar_lea.sflag [#allocation9], 1
    %431 = vsyncpa %s430, 1

</llo_original>
